<compile_context>
chip_gen: v7x
topology: tpu7x:2x2x1
jax: 0.10.0
libtpu: 0.0.40
codegen_flags: <defaults>
</compile_context>

<pallas_src>
import functools

import jax
import jax.numpy as jnp
from jax.experimental import pallas as pl
from jax.experimental.pallas import tpu as pltpu

_LANE = 128
_SUBLANE = 8


def _reward_net_kernel(x_ref, w1_ref, w2_ref, w3t_ref, vec_ref, b3_ref, o_ref,
                       *, hs, eps, row_chunk):
    tb = x_ref.shape[0]
    cdt = w1_ref.dtype                       # matmul compute dtype (bf16 or f32)

    vec = vec_ref[...]                       # (8, hp) f32 packed constants
    b1 = vec[0:1, :]
    b2 = vec[1:2, :]
    gamma = vec[2:3, :]
    beta = vec[3:4, :]
    lane_mask = vec[4:5, :]                  # 1.0 on the real hs columns, 0.0 on pad
    b3 = b3_ref[...]                         # (2, 1) f32

    inv_hs = 1.0 / hs

    # Static chunking over the rows of the batch tile keeps every intermediate
    # at <= (row_chunk, hp) f32 (<= 16 vregs) instead of (TB, hp).
    for s in range(0, tb, row_chunk):
        csz = min(row_chunk, tb - s)

        # fc1 + ReLU (f32 accumulate, bias in f32)
        xc = x_ref[s:s + csz, :].astype(cdt)
        h1 = jnp.dot(xc, w1_ref[...], preferred_element_type=jnp.float32) + b1
        h1 = jnp.maximum(h1, 0.0)

        # fc2
        h2 = jnp.dot(h1.astype(cdt), w2_ref[...],
                     preferred_element_type=jnp.float32) + b2

        # LayerNorm over the real hs features (two-pass variance).  Padded
        # columns of h2 are exactly zero (zero-padded W/b), so the lane-wide
        # sum equals the sum over the real columns; the centered values are
        # masked so padded lanes contribute nothing to the variance.
        mean = jnp.sum(h2, axis=-1, keepdims=True) * inv_hs
        centered = (h2 - mean) * lane_mask
        var = jnp.sum(centered * centered, axis=-1, keepdims=True) * inv_hs
        h = centered * jax.lax.rsqrt(var + eps) * gamma + beta

        # ReLU + fc3, emitted directly in the transposed (2, csz) layout:
        # (2, hp) x (csz, hp)^T on the MXU, no in-kernel transpose needed.
        h = jnp.maximum(h, 0.0)
        out = jax.lax.dot_general(
            w3t_ref[...], h.astype(cdt),
            (((1,), (1,)), ((), ())),
            preferred_element_type=jnp.float32) + b3

        o_ref[:, s:s + csz] = out.astype(o_ref.dtype)


def _pad_to(x, shape):
    pads = [(0, t - s) for s, t in zip(x.shape, shape)]
    return jnp.pad(x, pads)


def prepare_params(params, *, hs=100, matmul_dtype=jnp.bfloat16):
    """Pad / pack / cast the weights once (outside the per-step forward path)."""
    w1, b1, w2, b2, gamma, beta, w3, b3 = params
    din = w1.shape[0]
    hp = ((hs + _LANE - 1) // _LANE) * _LANE      # lane-pad hidden dim (100 -> 128)

    vec = jnp.zeros((_SUBLANE, hp), jnp.float32)
    vec = vec.at[0, :hs].set(b1)
    vec = vec.at[1, :hs].set(b2)
    vec = vec.at[2, :hs].set(gamma)
    vec = vec.at[3, :hs].set(beta)
    vec = vec.at[4, :hs].set(1.0)                 # lane mask for the real columns

    return dict(
        din=din, hs=hs, hp=hp,
        w1=_pad_to(w1, (din, hp)).astype(matmul_dtype),
        w2=_pad_to(w2, (hp, hp)).astype(matmul_dtype),
        w3t=_pad_to(w3.T, (2, hp)).astype(matmul_dtype),   # (2, hp) for transposed fc3
        vec=vec,
        b3=b3.reshape(2, 1).astype(jnp.float32),
    )


def _pick_batch_tile(B, tb_max):
    """Batch tile for the transposed (2, B) output.

    TB is the *lane* dim of the output block, so it must be a multiple of 128
    unless a single block covers the whole batch.  When one block would cover
    everything and B > 128, halve it so >= 2 grid blocks exist (v7x has two
    TensorCores that only both get work with >= 2 parallel blocks).
    """
    if B <= _LANE:
        return B
    b128 = ((B + _LANE - 1) // _LANE) * _LANE
    tb_max = ((tb_max + _LANE - 1) // _LANE) * _LANE
    TB = min(tb_max, b128)
    if pl.cdiv(B, TB) < 2 and TB > _LANE:
        TB = ((TB // 2 + _LANE - 1) // _LANE) * _LANE
    return TB


def reward_net_forward(x, padded, *, eps=1e-5, tb=512, row_chunk=128):
    """x: (B, ns+na+latent_dim) float32 -> (B, 2) float32."""
    B, din = x.shape
    assert din == padded["din"]
    hp, hs = padded["hp"], padded["hs"]

    TB = _pick_batch_tile(B, tb)
    grid = (pl.cdiv(B, TB),)

    kernel = functools.partial(_reward_net_kernel, hs=float(hs), eps=float(eps),
                               row_chunk=row_chunk)
    rep = lambda i: (0, 0)   # grid-invariant blocks: no per-step re-DMA

    weight_bytes = int(
        (padded["w1"].size + padded["w2"].size + padded["w3t"].size)
        * padded["w1"].dtype.itemsize
        + padded["vec"].size * 4 + padded["b3"].size * 4)
    cost = pl.CostEstimate(
        flops=int(2 * B * (din * hs + hs * hs + 2 * hs) + 8 * B * hs),
        transcendentals=int(B),
        bytes_accessed=int(4 * B * din + 4 * 2 * B + weight_bytes),
    )

    out_t = pl.pallas_call(
        kernel,
        out_shape=jax.ShapeDtypeStruct((2, B), jnp.float32),
        grid_spec=pltpu.PrefetchScalarGridSpec(
            num_scalar_prefetch=0,
            grid=grid,
            in_specs=[
                pl.BlockSpec((TB, din), lambda i: (i, 0)),   # x tile
                pl.BlockSpec((din, hp), rep),                # W1
                pl.BlockSpec((hp, hp), rep),                 # W2
                pl.BlockSpec((2, hp), rep),                  # W3^T (lane-padded K)
                pl.BlockSpec((_SUBLANE, hp), rep),           # packed b1/b2/gamma/beta/mask
                pl.BlockSpec((2, 1), rep),                   # b3
            ],
            out_specs=pl.BlockSpec((2, TB), lambda i: (0, i)),
        ),
        compiler_params=pltpu.CompilerParams(
            dimension_semantics=("parallel",)),
        cost_estimate=cost,
    )(x, padded["w1"], padded["w2"], padded["w3t"], padded["vec"], padded["b3"])

    # Module semantics return (B, 2); this is a tiny (2, B) transpose, ~64x
    # cheaper than the old (B, 128) slice/copy.
    return out_t.T


def init_params(key, ns, na, latent_dim, hs=100):
    """Deterministic init matching torch.nn.Linear / LayerNorm shapes."""
    din = ns + na + latent_dim
    ks = jax.random.split(key, 6)

    def linear(kw, kb, fan_in, fan_out):
        bound = 1.0 / jnp.sqrt(fan_in)
        w = jax.random.uniform(kw, (fan_in, fan_out), jnp.float32, -bound, bound)
        b = jax.random.uniform(kb, (fan_out,), jnp.float32, -bound, bound)
        return w, b

    w1, b1 = linear(ks[0], ks[1], din, hs)
    w2, b2 = linear(ks[2], ks[3], hs, hs)
    w3, b3 = linear(ks[4], ks[5], hs, 2)
    gamma = jnp.ones((hs,), jnp.float32)
    beta = jnp.zeros((hs,), jnp.float32)
    return (w1, b1, w2, b2, gamma, beta, w3, b3)


def reference_forward(x, params, *, eps=1e-5):
    w1, b1, w2, b2, gamma, beta, w3, b3 = params
    h = jnp.maximum(x @ w1 + b1, 0.0)
    h = h @ w2 + b2
    mean = jnp.mean(h, axis=-1, keepdims=True)
    var = jnp.mean((h - mean) ** 2, axis=-1, keepdims=True)
    h = (h - mean) / jnp.sqrt(var + eps) * gamma + beta
    h = jnp.maximum(h, 0.0)
    return h @ w3 + b3


if __name__ == "__main__":
    ns, na, latent_dim, hs = 4, 2, 2, 100
    key = jax.random.PRNGKey(0)
    kx, kx2, kp = jax.random.split(key, 3)

    params = init_params(kp, ns, na, latent_dim, hs)
    # f32 matmul path: tight validation of the kernel structure.
    padded_f32 = prepare_params(params, hs=hs, matmul_dtype=jnp.float32)
    # bf16 matmul path: 2x MXU rate + half the weight/x vreg footprint.
    padded_bf16 = prepare_params(params, hs=hs, matmul_dtype=jnp.bfloat16)

    # Small case (B=2): single full-batch block.
    x_small = jax.random.normal(kx, (2, ns + na + latent_dim), jnp.float32)
    # Ragged case (B=300): multi-block grid (TB=256 -> 2 blocks) + masked tail.
    x_large = jax.random.normal(kx2, (300, ns + na + latent_dim), jnp.float32)

    for xin in (x_small, x_large):
        ref = reference_forward(xin, params)

        out_f32 = jax.block_until_ready(reward_net_forward(xin, padded_f32))
        assert out_f32.shape == (xin.shape[0], 2)
        assert jnp.allclose(out_f32, ref, atol=1e-4, rtol=1e-4)

        out_bf16 = jax.block_until_ready(reward_net_forward(xin, padded_bf16))
        assert out_bf16.shape == (xin.shape[0], 2)
        assert jnp.allclose(out_bf16, ref, atol=5e-2, rtol=5e-2)

    print("KERNEL_OK")
</pallas_src>

<mosaic_0001>
module attributes {stable_mosaic.version = 11 : i64} {
  func.func @_reward_net_kernel(%arg0: i32, %arg1: memref<2x8xf32, #tpu.memory_space<vmem>>, %arg2: memref<8x128xf32, #tpu.memory_space<vmem>>, %arg3: memref<128x128xf32, #tpu.memory_space<vmem>>, %arg4: memref<2x128xf32, #tpu.memory_space<vmem>>, %arg5: memref<8x128xf32, #tpu.memory_space<vmem>>, %arg6: memref<2x1xf32, #tpu.memory_space<vmem>>, %arg7: memref<2x2xf32, #tpu.memory_space<vmem>>) attributes {dimension_semantics = [#tpu.dimension_semantics<parallel>], iteration_bounds = array<i64: 1>, scalar_prefetch = 0 : i64, scratch_operands = 0 : i64, tpu.core_type = #tpu.core_type<tc>, window_params = [{transform_indices = @transform_0, window_bounds = array<i64: 2, 8>}, {pipeline_mode = #tpu.pipeline_mode<synchronous>, transform_indices = @transform_1, window_bounds = array<i64: 8, 128>}, {pipeline_mode = #tpu.pipeline_mode<synchronous>, transform_indices = @transform_2, window_bounds = array<i64: 128, 128>}, {pipeline_mode = #tpu.pipeline_mode<synchronous>, transform_indices = @transform_3, window_bounds = array<i64: 2, 128>}, {pipeline_mode = #tpu.pipeline_mode<synchronous>, transform_indices = @transform_4, window_bounds = array<i64: 8, 128>}, {pipeline_mode = #tpu.pipeline_mode<synchronous>, transform_indices = @transform_5, window_bounds = array<i64: 2, 1>}, {transform_indices = @transform_6, window_bounds = array<i64: 2, 2>}]} {
    %c0 = arith.constant 0 : index
    %c0_0 = arith.constant 0 : index
    %0 = vector.load %arg5[%c0, %c0_0] : memref<8x128xf32, #tpu.memory_space<vmem>>, vector<8x128xf32>
    %1 = vector.extract_strided_slice %0 {offsets = [0, 0], sizes = [1, 128], strides = [1, 1]} : vector<8x128xf32> to vector<1x128xf32>
    %2 = vector.extract_strided_slice %0 {offsets = [1, 0], sizes = [1, 128], strides = [1, 1]} : vector<8x128xf32> to vector<1x128xf32>
    %3 = vector.extract_strided_slice %0 {offsets = [2, 0], sizes = [1, 128], strides = [1, 1]} : vector<8x128xf32> to vector<1x128xf32>
    %4 = vector.extract_strided_slice %0 {offsets = [3, 0], sizes = [1, 128], strides = [1, 1]} : vector<8x128xf32> to vector<1x128xf32>
    %5 = vector.extract_strided_slice %0 {offsets = [4, 0], sizes = [1, 128], strides = [1, 1]} : vector<8x128xf32> to vector<1x128xf32>
    %c0_1 = arith.constant 0 : index
    %c0_2 = arith.constant 0 : index
    %6 = vector.load %arg6[%c0_1, %c0_2] : memref<2x1xf32, #tpu.memory_space<vmem>>, vector<2x1xf32>
    %c0_3 = arith.constant 0 : index
    %c0_4 = arith.constant 0 : index
    %7 = vector.load %arg1[%c0_3, %c0_4] : memref<2x8xf32, #tpu.memory_space<vmem>>, vector<2x8xf32>
    %c0_5 = arith.constant 0 : index
    %c0_6 = arith.constant 0 : index
    %8 = vector.load %arg2[%c0_5, %c0_6] : memref<8x128xf32, #tpu.memory_space<vmem>>, vector<8x128xf32>
    %cst = arith.constant dense<0.000000e+00> : vector<2x128xf32>
    %9 = tpu.matmul %7, %8, %cst {dimension_numbers = #tpu.dot_dimension_numbers<[1], [0], [0], [1], [0, 0, 1, 1], [], []>} : vector<2x8xf32>, vector<8x128xf32>, vector<2x128xf32> -> vector<2x128xf32>
    %10 = vector.broadcast %1 : vector<1x128xf32> to vector<2x128xf32>
    %11 = arith.addf %9, %10 : vector<2x128xf32>
    %cst_7 = arith.constant 0.000000e+00 : f32
    %12 = vector.broadcast %cst_7 : f32 to vector<2x128xf32>
    %13 = arith.maximumf %11, %12 : vector<2x128xf32>
    %c0_8 = arith.constant 0 : index
    %c0_9 = arith.constant 0 : index
    %14 = vector.load %arg3[%c0_8, %c0_9] : memref<128x128xf32, #tpu.memory_space<vmem>>, vector<128x128xf32>
    %cst_10 = arith.constant dense<0.000000e+00> : vector<2x128xf32>
    %15 = tpu.matmul %13, %14, %cst_10 {dimension_numbers = #tpu.dot_dimension_numbers<[1], [0], [0], [1], [0, 0, 1, 1], [], []>} : vector<2x128xf32>, vector<128x128xf32>, vector<2x128xf32> -> vector<2x128xf32>
    %16 = vector.broadcast %2 : vector<1x128xf32> to vector<2x128xf32>
    %17 = arith.addf %15, %16 : vector<2x128xf32>
    %cst_11 = arith.constant dense<0.000000e+00> : vector<2xf32>
    %18 = vector.multi_reduction <add>, %17, %cst_11 [1] : vector<2x128xf32> to vector<2xf32>
    %19 = vector.shape_cast %18 : vector<2xf32> to vector<2x1xf32>
    %cst_12 = arith.constant 0.00999999977 : f32
    %20 = vector.broadcast %cst_12 : f32 to vector<2x1xf32>
    %21 = arith.mulf %19, %20 : vector<2x1xf32>
    %22 = vector.broadcast %21 : vector<2x1xf32> to vector<2x128xf32>
    %23 = arith.subf %17, %22 : vector<2x128xf32>
    %24 = vector.broadcast %5 : vector<1x128xf32> to vector<2x128xf32>
    %25 = arith.mulf %23, %24 : vector<2x128xf32>
    %26 = arith.mulf %25, %25 : vector<2x128xf32>
    %cst_13 = arith.constant dense<0.000000e+00> : vector<2xf32>
    %27 = vector.multi_reduction <add>, %26, %cst_13 [1] : vector<2x128xf32> to vector<2xf32>
    %28 = vector.shape_cast %27 : vector<2xf32> to vector<2x1xf32>
    %cst_14 = arith.constant 0.00999999977 : f32
    %29 = vector.broadcast %cst_14 : f32 to vector<2x1xf32>
    %30 = arith.mulf %28, %29 : vector<2x1xf32>
    %cst_15 = arith.constant 9.99999974E-6 : f32
    %31 = vector.broadcast %cst_15 : f32 to vector<2x1xf32>
    %32 = arith.addf %30, %31 : vector<2x1xf32>
    %33 = math.rsqrt %32 : vector<2x1xf32>
    %34 = vector.broadcast %33 : vector<2x1xf32> to vector<2x128xf32>
    %35 = arith.mulf %25, %34 : vector<2x128xf32>
    %36 = vector.broadcast %3 : vector<1x128xf32> to vector<2x128xf32>
    %37 = arith.mulf %35, %36 : vector<2x128xf32>
    %38 = vector.broadcast %4 : vector<1x128xf32> to vector<2x128xf32>
    %39 = arith.addf %37, %38 : vector<2x128xf32>
    %cst_16 = arith.constant 0.000000e+00 : f32
    %40 = vector.broadcast %cst_16 : f32 to vector<2x128xf32>
    %41 = arith.maximumf %39, %40 : vector<2x128xf32>
    %c0_17 = arith.constant 0 : index
    %c0_18 = arith.constant 0 : index
    %42 = vector.load %arg4[%c0_17, %c0_18] : memref<2x128xf32, #tpu.memory_space<vmem>>, vector<2x128xf32>
    %cst_19 = arith.constant dense<0.000000e+00> : vector<2x2xf32>
    %43 = tpu.matmul %42, %41, %cst_19 {dimension_numbers = #tpu.dot_dimension_numbers<[1], [1], [0], [0], [0, 0, 1, 0], [], []>} : vector<2x128xf32>, vector<2x128xf32>, vector<2x2xf32> -> vector<2x2xf32>
    %44 = vector.broadcast %6 : vector<2x1xf32> to vector<2x2xf32>
    %45 = arith.addf %43, %44 : vector<2x2xf32>
    %c0_20 = arith.constant 0 : index
    %c0_21 = arith.constant 0 : index
    %46 = vector.load %arg7[%c0_20, %c0_21] : memref<2x2xf32, #tpu.memory_space<vmem>>, vector<2x2xf32>
    tpu.vector_store %arg7[%c0_20, %c0_21], %45 {strides = array<i32>} : memref<2x2xf32, #tpu.memory_space<vmem>>, vector<2x2xf32>,
    return
  }
  func.func @transform_0(%arg0: i32) -> (i32, i32) {
    %c0_i32 = arith.constant 0 : i32
    %c0_i32_0 = arith.constant 0 : i32
    return %arg0, %c0_i32 : i32, i32
  }
  func.func @transform_1(%arg0: i32) -> (i32, i32) {
    %c0_i32 = arith.constant 0 : i32
    %c0_i32_0 = arith.constant 0 : i32
    %c0_i32_1 = arith.constant 0 : i32
    return %c0_i32, %c0_i32_0 : i32, i32
  }
  func.func @transform_2(%arg0: i32) -> (i32, i32) {
    %c0_i32 = arith.constant 0 : i32
    %c0_i32_0 = arith.constant 0 : i32
    %c0_i32_1 = arith.constant 0 : i32
    return %c0_i32, %c0_i32_0 : i32, i32
  }
  func.func @transform_3(%arg0: i32) -> (i32, i32) {
    %c0_i32 = arith.constant 0 : i32
    %c0_i32_0 = arith.constant 0 : i32
    %c0_i32_1 = arith.constant 0 : i32
    return %c0_i32, %c0_i32_0 : i32, i32
  }
  func.func @transform_4(%arg0: i32) -> (i32, i32) {
    %c0_i32 = arith.constant 0 : i32
    %c0_i32_0 = arith.constant 0 : i32
    %c0_i32_1 = arith.constant 0 : i32
    return %c0_i32, %c0_i32_0 : i32, i32
  }
  func.func @transform_5(%arg0: i32) -> (i32, i32) {
    %c0_i32 = arith.constant 0 : i32
    %c0_i32_0 = arith.constant 0 : i32
    %c0_i32_1 = arith.constant 0 : i32
    return %c0_i32, %c0_i32_0 : i32, i32
  }
  func.func @transform_6(%arg0: i32) -> (i32, i32) {
    %c0_i32 = arith.constant 0 : i32
    %c0_i32_0 = arith.constant 0 : i32
    return %c0_i32, %arg0 : i32, i32
  }
}

</mosaic_0001>

<llo_original>
// kernel: tpu_custom_call.1
$region0: #{tpu_custom_call.1}
  #allocation0 [shape = 'u32[]', space=smem, size = 0x4, offset = 0x4, fixed_abs, tag = 'smem constant byte address 0x4 - core index']
  #allocation1 [shape = 'u32[144,128]{1,0:T(1,128)}', space=vmem, size = 0x12000, scoped, tag = 'internal scratch']
  %s0 = inlined_call_operand.vmem [shape: f32[2,8], index: 0, kind: input, shape index: {}]
  %s1 = inlined_call_operand.hbm [shape: f32[8,128], index: 1, kind: input, shape index: {}]
  %s2 = inlined_call_operand.hbm [shape: f32[128,128], index: 2, kind: input, shape index: {}]
  %s3 = inlined_call_operand.vmem [shape: f32[2,128], index: 3, kind: input, shape index: {}]
  %s4 = inlined_call_operand.vmem [shape: f32[8,128], index: 4, kind: input, shape index: {}]
  %s5 = inlined_call_operand.vmem [shape: f32[2,1], index: 5, kind: input, shape index: {}]
  %s6 = inlined_call_operand.hbm [shape: f32[2,2], index: 6, kind: output, shape index: {}]
  %s7 = sld [smem:[#allocation0]]
  $region42: #{tpu_custom_call.1} parent=0
    _
  %s9 = ssub.s32 1, %s7
  %s10 = scalar_select 0, %s9, %s7
  $region1: #{tpu_custom_call.1} parent=0
    #allocation2 [shape = 'u8[4096]{0}', space=vmem, size = 0x1000, scoped, tag = 'input window, operand 1, single buffered']
    #allocation3 [shape = 's32[1]{0}', space=sflag, size = 0x4, scoped, tag = 'scoped memory for tpu_custom_call.1']
    #allocation4 [shape = 's32[1]{0}', space=sflag, size = 0x4, scoped, tag = 'scoped memory for tpu_custom_call.1']
    #allocation5 [shape = 'u8[65536]{0}', space=vmem, size = 0x10000, scoped, tag = 'input window, operand 2, single buffered']
    #allocation6 [shape = 's32[1]{0}', space=sflag, size = 0x4, scoped, tag = 'scoped memory for tpu_custom_call.1']
    #allocation7 [shape = 'u8[1024]{0}', space=vmem, size = 0x400, scoped, tag = 'output window, operand 0, single buffered']
    %11 = vsyncpa [#allocation3], 0
    %12 = vsyncpa [#allocation6], 0
    %13 = vsyncpa [#allocation4], 0
    // Predicated region
    $region2: #{tpu_custom_call.1} parent=1 // pred_check
      _
    $region3: #{tpu_custom_call.1} parent=1 // pred_check_branch
      %15 = sbr.rel (0) target = $region5
    $region4: #{tpu_custom_call.1} parent=1 // pred_region
      _
    $region5: #{tpu_custom_call.1} parent=1 // pred_fallthru
      _
    // Predicated region
    $region6: #{tpu_custom_call.1} parent=1 // pred_check
      _
    $region7: #{tpu_custom_call.1} parent=1 // pred_check_branch
      %17 = sbr.rel (0) target = $region9
    $region8: #{tpu_custom_call.1} parent=1 // pred_region
      %s19 = ssub.s32 128, 128
      %20 = vsyncadd [#allocation3], %s19
      %s22 = sshll.u32 [#allocation2], 4
      %s23 = int_to_ptr.vmem [resolvable:$true] %s22
      %25 = dma.hbm_to_vmem [thread:$0]  %s1, 128, %s23, [#allocation3]
    $region9: #{tpu_custom_call.1} parent=1 // pred_fallthru
      _
    // Predicated region
    $region10: #{tpu_custom_call.1} parent=1 // pred_check
      _
    $region11: #{tpu_custom_call.1} parent=1 // pred_check_branch
      %27 = sbr.rel (0) target = $region13
    $region12: #{tpu_custom_call.1} parent=1 // pred_region
      %s29 = ssub.s32 2048, 2048
      %30 = vsyncadd [#allocation6], %s29
      %s31 = sshll.u32 [#allocation5], 4
      %s32 = int_to_ptr.vmem [resolvable:$true] %s31
      %37 = dma.hbm_to_vmem [thread:$0]  %s2, 2048, %s32, [#allocation6], 128, 128, 8
    $region13: #{tpu_custom_call.1} parent=1 // pred_fallthru
      _
    // Predicated region
    $region14: #{tpu_custom_call.1} parent=1 // pred_check
      _
    $region15: #{tpu_custom_call.1} parent=1 // pred_check_branch
      %39 = sbr.rel (0) target = $region17
    $region16: #{tpu_custom_call.1} parent=1 // pred_region
      _
    $region17: #{tpu_custom_call.1} parent=1 // pred_fallthru
      _
    // Predicated region
    $region18: #{tpu_custom_call.1} parent=1 // pred_check
      _
    $region19: #{tpu_custom_call.1} parent=1 // pred_check_branch
      %41 = sbr.rel (0) target = $region21
    $region20: #{tpu_custom_call.1} parent=1 // pred_region
      _
    $region21: #{tpu_custom_call.1} parent=1 // pred_fallthru
      _
    // Predicated region
    $region22: #{tpu_custom_call.1} parent=1 // pred_check
      _
    $region23: #{tpu_custom_call.1} parent=1 // pred_check_branch
      %43 = sbr.rel (0) target = $region25
    $region24: #{tpu_custom_call.1} parent=1 // pred_region
      _
    $region25: #{tpu_custom_call.1} parent=1 // pred_fallthru
      _
    // Predicated region
    $region26: #{tpu_custom_call.1} parent=1 // pred_check
      _
    $region27: #{tpu_custom_call.1} parent=1 // pred_check_branch
      %45 = sbr.rel (0) target = $region29
    $region28: #{tpu_custom_call.1} parent=1 // pred_region
      %46 = dma.done [#allocation3], 128
    $region29: #{tpu_custom_call.1} parent=1 // pred_fallthru
      _
    // Predicated region
    $region30: #{tpu_custom_call.1} parent=1 // pred_check
      _
    $region31: #{tpu_custom_call.1} parent=1 // pred_check_branch
      %48 = sbr.rel (0) target = $region33
    $region32: #{tpu_custom_call.1} parent=1 // pred_region
      %49 = dma.done [#allocation6], 2048
    $region33: #{tpu_custom_call.1} parent=1 // pred_fallthru
      _
    %v50 = vld [vmem:[%s4] sm:$0xff]
    %v51 = vld [vmem:[%s5] sm:$0x3]
    %v52 = vld [vmem:[%s0] sm:$0x3]
    %v53 = vld [vmem:[#allocation2] sm:$0xff]
    %v54 = vlaneseq
    %v55 = vshrl.u32 %v54, 7
    %v56 = vsub.s32 0, %v55
    %v57 = vrot.slane %v50, %v56
    %vm58 = vcmask 64512
    %v60 = vsel %vm58, %v52, 0
    %62 = vmatprep.subr.mxu0 0.0
    %63 = vmatpush1.msra.mxu0 %v53
    %64 = vmatprep.subr.mxu0 0.0
    %65 = vmatpush1.msra.mxu0 0.0
    %66 = vmatprep.subr.mxu0 0.0
    %67 = vmatpush1.msra.mxu0 0.0
    %68 = vmatprep.subr.mxu0 0.0
    %69 = vmatpush1.msra.mxu0 0.0
    %70 = vmatprep.subr.mxu0 0.0
    %71 = vmatpush1.msra.mxu0 0.0
    %72 = vmatprep.subr.mxu0 0.0
    %73 = vmatpush1.msra.mxu0 0.0
    %74 = vmatprep.subr.mxu0 0.0
    %75 = vmatpush1.msra.mxu0 0.0
    %76 = vmatprep.subr.mxu0 0.0
    %77 = vmatpush1.msra.mxu0 0.0
    %78 = vmatprep.subr.mxu0 0.0
    %79 = vmatpush1.msra.mxu0 0.0
    %80 = vmatprep.subr.mxu0 0.0
    %81 = vmatpush1.msra.mxu0 0.0
    %82 = vmatprep.subr.mxu0 0.0
    %83 = vmatpush1.msra.mxu0 0.0
    %84 = vmatprep.subr.mxu0 0.0
    %85 = vmatpush1.msra.mxu0 0.0
    %86 = vmatprep.subr.mxu0 0.0
    %87 = vmatpush1.msra.mxu0 0.0
    %88 = vmatprep.subr.mxu0 0.0
    %89 = vmatpush1.msra.mxu0 0.0
    %90 = vmatprep.subr.mxu0 0.0
    %91 = vmatpush1.msra.mxu0 0.0
    %92 = vmatprep.subr.mxu0 0.0
    %93 = vmatpush1.msra.mxu0 0.0
    %94 = vmatprep.subr.mxu0 0.0
    %95 = vmatpush1.msra.mxu0 0.0
    %96 = vmatprep.subr.mxu0 0.0
    %97 = vmatpush1.msra.mxu0 0.0
    %98 = vmatprep.subr.mxu0 0.0
    %99 = vmatpush1.msra.mxu0 0.0
    %100 = vmatprep.subr.mxu0 0.0
    %101 = vmatpush1.msra.mxu0 0.0
    %102 = vmatprep.subr.mxu0 0.0
    %103 = vmatpush1.msra.mxu0 0.0
    %104 = vmatprep.subr.mxu0 0.0
    %105 = vmatpush1.msra.mxu0 0.0
    %106 = vmatprep.subr.mxu0 0.0
    %107 = vmatpush1.msra.mxu0 0.0
    %108 = vmatprep.subr.mxu0 0.0
    %109 = vmatpush1.msra.mxu0 0.0
    %110 = vmatprep.subr.mxu0 0.0
    %111 = vmatpush1.msra.mxu0 0.0
    %112 = vmatprep.subr.mxu0 0.0
    %113 = vmatpush1.msra.mxu0 0.0
    %114 = vmatprep.subr.mxu0 0.0
    %115 = vmatpush1.msra.mxu0 0.0
    %116 = vmatprep.subr.mxu0 0.0
    %117 = vmatpush1.msra.mxu0 0.0
    %118 = vmatprep.subr.mxu0 0.0
    %119 = vmatpush1.msra.mxu0 0.0
    %120 = vmatprep.subr.mxu0 0.0
    %121 = vmatpush1.msra.mxu0 0.0
    %122 = vmatprep.subr.mxu0 0.0
    %123 = vmatpush1.msra.mxu0 0.0
    %124 = vmatprep.subr.mxu0 0.0
    %125 = vmatpush1.msra.mxu0 0.0
    %126 = vmatprep.mubr.f32.mxu0 0.0
    %127 = vmatmul.mubr.f32.gmra.mrb[0].mxu0 %v60
    %v128 = vpop.f32.mrb[0].mxu0
    %v129 = vadd.f32 %v57, %v128
    %v130 = vpop.f32.mrb[0].mxu0
    %131 = vdwg.mxu0
    %v132 = vmax.f32 %v129, 0.0
    %v133 = vld [vmem:[#allocation5] sm:$0xff]
    %v134 = vld [vmem:[#allocation5 + $0x8] sm:$0xff]
    %v135 = vld [vmem:[#allocation5 + $0x10] sm:$0xff]
    %v136 = vld [vmem:[#allocation5 + $0x18] sm:$0xff]
    %v137 = vld [vmem:[#allocation5 + $0x20] sm:$0xff]
    %v138 = vld [vmem:[#allocation5 + $0x28] sm:$0xff]
    %v139 = vld [vmem:[#allocation5 + $0x30] sm:$0xff]
    %v140 = vld [vmem:[#allocation5 + $0x38] sm:$0xff]
    %v141 = vld [vmem:[#allocation5 + $0x40] sm:$0xff]
    %v142 = vld [vmem:[#allocation5 + $0x48] sm:$0xff]
    %v143 = vld [vmem:[#allocation5 + $0x50] sm:$0xff]
    %v144 = vld [vmem:[#allocation5 + $0x58] sm:$0xff]
    %v145 = vld [vmem:[#allocation5 + $0x60] sm:$0xff]
    %v146 = vld [vmem:[#allocation5 + $0x68] sm:$0xff]
    %v147 = vld [vmem:[#allocation5 + $0x70] sm:$0xff]
    %v148 = vld [vmem:[#allocation5 + $0x78] sm:$0xff]
    %v149 = vlaneseq
    %v150 = vshrl.u32 %v149, 7
    %v151 = vsub.s32 1, %v150
    %v152 = vrot.slane %v50, %v151
    %153 = vmatprep.subr.mxu0 0.0
    %154 = vmatpush1.msra.mxu0 %v133
    %155 = vmatprep.subr.mxu0 0.0
    %156 = vmatpush1.msra.mxu0 %v134
    %157 = vmatprep.subr.mxu0 0.0
    %158 = vmatpush1.msra.mxu0 %v135
    %159 = vmatprep.subr.mxu0 0.0
    %160 = vmatpush1.msra.mxu0 %v136
    %161 = vmatprep.subr.mxu0 0.0
    %162 = vmatpush1.msra.mxu0 %v137
    %163 = vmatprep.subr.mxu0 0.0
    %164 = vmatpush1.msra.mxu0 %v138
    %165 = vmatprep.subr.mxu0 0.0
    %166 = vmatpush1.msra.mxu0 %v139
    %167 = vmatprep.subr.mxu0 0.0
    %168 = vmatpush1.msra.mxu0 %v140
    %169 = vmatprep.subr.mxu0 0.0
    %170 = vmatpush1.msra.mxu0 %v141
    %171 = vmatprep.subr.mxu0 0.0
    %172 = vmatpush1.msra.mxu0 %v142
    %173 = vmatprep.subr.mxu0 0.0
    %174 = vmatpush1.msra.mxu0 %v143
    %175 = vmatprep.subr.mxu0 0.0
    %176 = vmatpush1.msra.mxu0 %v144
    %177 = vmatprep.subr.mxu0 0.0
    %178 = vmatpush1.msra.mxu0 %v145
    %179 = vmatprep.subr.mxu0 0.0
    %180 = vmatpush1.msra.mxu0 %v146
    %181 = vmatprep.subr.mxu0 0.0
    %182 = vmatpush1.msra.mxu0 %v147
    %183 = vmatprep.subr.mxu0 0.0
    %184 = vmatpush1.msra.mxu0 %v148
    %185 = vmatprep.subr.mxu0 0.0
    %186 = vmatpush1.msra.mxu0 0.0
    %187 = vmatprep.subr.mxu0 0.0
    %188 = vmatpush1.msra.mxu0 0.0
    %189 = vmatprep.subr.mxu0 0.0
    %190 = vmatpush1.msra.mxu0 0.0
    %191 = vmatprep.subr.mxu0 0.0
    %192 = vmatpush1.msra.mxu0 0.0
    %193 = vmatprep.subr.mxu0 0.0
    %194 = vmatpush1.msra.mxu0 0.0
    %195 = vmatprep.subr.mxu0 0.0
    %196 = vmatpush1.msra.mxu0 0.0
    %197 = vmatprep.subr.mxu0 0.0
    %198 = vmatpush1.msra.mxu0 0.0
    %199 = vmatprep.subr.mxu0 0.0
    %200 = vmatpush1.msra.mxu0 0.0
    %201 = vmatprep.subr.mxu0 0.0
    %202 = vmatpush1.msra.mxu0 0.0
    %203 = vmatprep.subr.mxu0 0.0
    %204 = vmatpush1.msra.mxu0 0.0
    %205 = vmatprep.subr.mxu0 0.0
    %206 = vmatpush1.msra.mxu0 0.0
    %207 = vmatprep.subr.mxu0 0.0
    %208 = vmatpush1.msra.mxu0 0.0
    %209 = vmatprep.subr.mxu0 0.0
    %210 = vmatpush1.msra.mxu0 0.0
    %211 = vmatprep.subr.mxu0 0.0
    %212 = vmatpush1.msra.mxu0 0.0
    %213 = vmatprep.subr.mxu0 0.0
    %214 = vmatpush1.msra.mxu0 0.0
    %215 = vmatprep.subr.mxu0 0.0
    %216 = vmatpush1.msra.mxu0 0.0
    %217 = vmatprep.mubr.f32.mxu0 0.0
    %218 = vmatmul.mubr.f32.gmra.mrb[0].mxu0 %v132
    %v219 = vpop.f32.mrb[0].mxu0
    %v220 = vadd.f32 %v152, %v219
    %v221 = vpop.f32.mrb[0].mxu0
    %222 = vdwg.mxu0
    %vm223 = vcmask 1041408
    %v224 = vsel %vm223, %v220, 0.0
    %225 = vadd.xlane.f32.xlu0 %v224
    %v226 = vpop.xlane.xlu0 %225
    %v227 = vmul.f32 %v226, 0.01
    %v228 = vsub.f32 %v220, %v227
    %v229 = vlaneseq
    %v230 = vshrl.u32 %v229, 7
    %v231 = vsub.s32 4, %v230
    %v232 = vrot.slane %v50, %v231
    %v233 = vmul.f32 %v228, %v232
    %v234 = vmul.f32 %v233, %v233
    %v235 = vsel %vm223, %v234, 0.0
    %236 = vadd.xlane.f32.xlu0 %v235
    %v237 = vpop.xlane.xlu0 %236
    %v238 = vmul.f32 %v237, 0.01
    %v239 = vadd.f32 %v238, 1e-05
    %v240 = vrsqrt.pop %v239
    %v241 = vmul.f32 %v233, %v240
    %v242 = vlaneseq
    %v243 = vshrl.u32 %v242, 7
    %v244 = vsub.s32 2, %v243
    %v245 = vrot.slane %v50, %v244
    %v246 = vmul.f32 %v241, %v245
    %v247 = vlaneseq
    %v248 = vshrl.u32 %v247, 7
    %v249 = vsub.s32 3, %v248
    %v250 = vrot.slane %v50, %v249
    %v251 = vadd.f32 %v246, %v250
    %v252 = vmax.f32 %v251, 0.0
    %v253 = vld [vmem:[%s3] sm:$0x3]
    %255 = vset.pattern.permute.xlu0 0
    %256 = vperm.xlu0 %255, %v51
    %v257 = vpop.permute.xlu0 %256
    %259 = vmatprep.subr.mxu0 0.0
    %260 = vmatpush1.xpose.msra.mxu0 %v252
    %261 = vmatprep.subr.mxu0 0.0
    %262 = vmatpush1.xpose.msra.mxu0 0.0
    %263 = vmatprep.subr.mxu0 0.0
    %264 = vmatpush1.xpose.msra.mxu0 0.0
    %265 = vmatprep.subr.mxu0 0.0
    %266 = vmatpush1.xpose.msra.mxu0 0.0
    %267 = vmatprep.subr.mxu0 0.0
    %268 = vmatpush1.xpose.msra.mxu0 0.0
    %269 = vmatprep.subr.mxu0 0.0
    %270 = vmatpush1.xpose.msra.mxu0 0.0
    %271 = vmatprep.subr.mxu0 0.0
    %272 = vmatpush1.xpose.msra.mxu0 0.0
    %273 = vmatprep.subr.mxu0 0.0
    %274 = vmatpush1.xpose.msra.mxu0 0.0
    %275 = vmatprep.subr.mxu0 0.0
    %276 = vmatpush1.xpose.msra.mxu0 0.0
    %277 = vmatprep.subr.mxu0 0.0
    %278 = vmatpush1.xpose.msra.mxu0 0.0
    %279 = vmatprep.subr.mxu0 0.0
    %280 = vmatpush1.xpose.msra.mxu0 0.0
    %281 = vmatprep.subr.mxu0 0.0
    %282 = vmatpush1.xpose.msra.mxu0 0.0
    %283 = vmatprep.subr.mxu0 0.0
    %284 = vmatpush1.xpose.msra.mxu0 0.0
    %285 = vmatprep.subr.mxu0 0.0
    %286 = vmatpush1.xpose.msra.mxu0 0.0
    %287 = vmatprep.subr.mxu0 0.0
    %288 = vmatpush1.xpose.msra.mxu0 0.0
    %289 = vmatprep.subr.mxu0 0.0
    %290 = vmatpush1.xpose.msra.mxu0 0.0
    %291 = vmatprep.subr.mxu0 0.0
    %292 = vmatpush1.xpose.msra.mxu0 0.0
    %293 = vmatprep.subr.mxu0 0.0
    %294 = vmatpush1.xpose.msra.mxu0 0.0
    %295 = vmatprep.subr.mxu0 0.0
    %296 = vmatpush1.xpose.msra.mxu0 0.0
    %297 = vmatprep.subr.mxu0 0.0
    %298 = vmatpush1.xpose.msra.mxu0 0.0
    %299 = vmatprep.subr.mxu0 0.0
    %300 = vmatpush1.xpose.msra.mxu0 0.0
    %301 = vmatprep.subr.mxu0 0.0
    %302 = vmatpush1.xpose.msra.mxu0 0.0
    %303 = vmatprep.subr.mxu0 0.0
    %304 = vmatpush1.xpose.msra.mxu0 0.0
    %305 = vmatprep.subr.mxu0 0.0
    %306 = vmatpush1.xpose.msra.mxu0 0.0
    %307 = vmatprep.subr.mxu0 0.0
    %308 = vmatpush1.xpose.msra.mxu0 0.0
    %309 = vmatprep.subr.mxu0 0.0
    %310 = vmatpush1.xpose.msra.mxu0 0.0
    %311 = vmatprep.subr.mxu0 0.0
    %312 = vmatpush1.xpose.msra.mxu0 0.0
    %313 = vmatprep.subr.mxu0 0.0
    %314 = vmatpush1.xpose.msra.mxu0 0.0
    %315 = vmatprep.subr.mxu0 0.0
    %316 = vmatpush1.xpose.msra.mxu0 0.0
    %317 = vmatprep.subr.mxu0 0.0
    %318 = vmatpush1.xpose.msra.mxu0 0.0
    %319 = vmatprep.subr.mxu0 0.0
    %320 = vmatpush1.xpose.msra.mxu0 0.0
    %321 = vmatprep.subr.mxu0 0.0
    %322 = vmatpush1.xpose.msra.mxu0 0.0
    %323 = vmatprep.mubr.f32.mxu0 0.0
    %324 = vmatmul.mubr.f32.gmra.mrb[0].mxu0 %v253
    %v325 = vpop.f32.mrb[0].mxu0
    %v326 = vadd.f32 %v257, %v325
    %v327 = vpop.f32.mrb[0].mxu0
    %328 = vdwg.mxu0
    %vm329 = vcmask 9216
    %330 = vst.msk [vmem:[#allocation7] sm:$0x3] %vm329, %v326
    // Predicated region
    $region34: #{tpu_custom_call.1} parent=1 // pred_check
      _
    $region35: #{tpu_custom_call.1} parent=1 // pred_check_branch
      %332 = sbr.rel (0) target = $region37
    $region36: #{tpu_custom_call.1} parent=1 // pred_region
      %s334 = ssub.s32 32, 32
      %335 = vsyncadd [#allocation4], %s334
      %s337 = sshll.u32 [#allocation7], 4
      %s338 = int_to_ptr.vmem [resolvable:$true] %s337
      %340 = dma.vmem_to_hbm [thread:$0]  %s338, 32, %s6, [#allocation4]
    $region37: #{tpu_custom_call.1} parent=1 // pred_fallthru
      _
    // Predicated region
    $region38: #{tpu_custom_call.1} parent=1 // pred_check
      _
    $region39: #{tpu_custom_call.1} parent=1 // pred_check_branch
      %342 = sbr.rel (0) target = $region41
    $region40: #{tpu_custom_call.1} parent=1 // pred_region
      %343 = dma.done [#allocation4], 32
    $region41: #{tpu_custom_call.1} parent=1 // pred_fallthru
      _
    %344 = vsyncpa [#allocation3], 1
    %345 = vsyncpa [#allocation6], 1
    %346 = vsyncpa [#allocation4], 1

</llo_original>
